<compile_context>
chip_gen: v6e
topology: v6e:2x2x1
jax: 0.10.0
libtpu: 0.0.40
codegen_flags: <defaults>
</compile_context>

<pallas_src>
import functools

import jax
import jax.numpy as jnp
import numpy as np
from jax.experimental import pallas as pl
from jax.experimental.pallas import tpu as pltpu

# "minus infinity" for masked (padded) cost entries; kept finite so that
# 0 * _NEG_BIG == 0 (no NaN) in the cost epilogue and no inf-inf anywhere.
_NEG_BIG = -1.0e30


def _sinkhorn_kernel(x_ref, y_ref, pi_ref, cost_ref, *, epsilon, iterations,
                     check_every, n_true, m_true):
    x = x_ref[...].astype(jnp.float32)            # (Np, Dp)
    y = y_ref[...].astype(jnp.float32)            # (Mp, Dp)
    Np, Dp = x.shape
    Mp = y.shape[0]

    eps = jnp.float32(epsilon)
    inv_eps = jnp.float32(1.0 / epsilon)
    threshold = jnp.float32(0.1)
    a_val = jnp.float32(1.0 / n_true + 1e-8)              # uniform marginal a
    log_a = jnp.float32(np.log(1.0 / n_true + 1e-8))
    log_b = jnp.float32(np.log(1.0 / m_true + 1e-8))

    # Padding masks (N padded to a sublane multiple, M to a lane multiple).
    row_valid = jax.lax.broadcasted_iota(jnp.int32, (Np, 1), 0) < n_true
    col_valid = jax.lax.broadcasted_iota(jnp.int32, (1, Mp), 1) < m_true
    valid = jnp.logical_and(row_valid, col_valid)

    # Ground metric (elementwise square) on the MXU:
    #   C[i,j] = ||x_i||^2 + ||y_j||^2 - 2 x_i.y_j   (clamped at 0).
    xsq = jnp.sum(x * x, axis=1, keepdims=True)                       # (Np, 1)
    ones_dp = jnp.ones((1, Dp), jnp.float32)
    ysq_row = jax.lax.dot_general(                                    # (1, Mp)
        ones_dp, y * y, (((1,), (1,)), ((), ())),
        preferred_element_type=jnp.float32)
    xy = jax.lax.dot_general(                                         # (Np, Mp)
        x, y, (((1,), (1,)), ((), ())),
        preferred_element_type=jnp.float32)
    C = jnp.maximum(xsq + ysq_row - 2.0 * xy, 0.0)
    # Scaled, masked cost: padded rows/cols get a large-negative filler so
    # exp() of them is exactly 0 and they drop out of every reduction.
    neg_c_eps = jnp.where(valid, C * (-inv_eps), jnp.float32(_NEG_BIG))

    ones_m = jnp.ones((Mp, 1), jnp.float32)       # MXU lane-axis row-sum helper

    def cond(carry):
        it, _, _, done = carry
        return jnp.logical_and(it < iterations, done == 0)

    def body(carry):
        it, f, g, _ = carry              # f: (Np,1) = u/eps, g: (1,Mp) = v/eps
        diff = jnp.float32(0.0)
        # check_every unrolled Sinkhorn steps per scalar convergence check.
        for step in range(check_every):
            K = neg_c_eps + f + g                                     # (Np, Mp)
            m_r = jnp.max(K, axis=1, keepdims=True)                   # (Np, 1)
            E = jnp.exp(K - m_r)               # the ONLY full-matrix exp / step
            s_r = jnp.dot(E, ones_m,
                          preferred_element_type=jnp.float32)         # (Np, 1)
            f_new = jnp.where(row_valid,
                              (log_a - (m_r + jnp.log(s_r))) + f, 0.0)
            # v-update via rank-1 correction of E (column max cancels exactly):
            #   sum_i exp(K[i,j] + f_new[i] - f[i]) = sum_i E[i,j] * a / s_r[i]
            # NOTE: skips the column-max stabilization of the reference; fine
            # unless an entire column's E underflows (pathological data).
            w = jnp.where(row_valid, a_val / s_r, 0.0)                # (Np, 1)
            col_sum = jnp.sum(E * w, axis=0, keepdims=True)   # sublane reduce
            lse_c = jnp.log(jnp.where(col_valid, col_sum, 1.0))       # (1, Mp)
            g_new = jnp.where(col_valid, (log_b - lse_c) + g, 0.0)
            if step == check_every - 1:
                # reference break criterion: sum|u-u0|+sum|v-v0| < 0.1, u = eps*f
                diff = eps * (jnp.sum(jnp.abs(f_new - f)) +
                              jnp.sum(jnp.abs(g_new - g)))
            f, g = f_new, g_new
        done = jnp.where(diff < threshold, jnp.int32(1), jnp.int32(0))
        return it + jnp.int32(check_every), f, g, done

    f0 = jnp.zeros((Np, 1), jnp.float32)
    g0 = jnp.zeros((1, Mp), jnp.float32)
    _, f, g, _ = jax.lax.while_loop(
        cond, body, (jnp.int32(0), f0, g0, jnp.int32(0)))

    pi = jnp.exp(neg_c_eps + f + g)      # padded entries underflow to exactly 0
    pi_ref[...] = pi.astype(pi_ref.dtype)
    # reduction='sum':  cost = sum(pi * C),  with C == -eps * neg_c_eps (valid).
    cost_ref[0] = -eps * jnp.sum(jnp.where(valid, pi * neg_c_eps, 0.0))


def _round_up(v, m):
    return ((v + m - 1) // m) * m


def _check_every(iterations):
    return max(k for k in (8, 4, 2, 1) if int(iterations) % k == 0)


@functools.partial(jax.jit, static_argnames=("epsilon", "iterations"))
def sinkhorn_pallas(x, y, *, epsilon=0.5, iterations=100):
    N, D = x.shape
    M, D2 = y.shape
    assert D == D2

    # Lane/sublane alignment: feature dim and M (lane axis of C/E/pi) padded
    # to multiples of 128, N (sublane axis) to a multiple of 8.  Zero feature
    # padding adds nothing to squared distances; padded rows/cols are masked
    # inside the kernel and sliced off below.
    Dp = _round_up(D, 128)
    Np = _round_up(N, 8)
    Mp = _round_up(M, 128)
    x = jnp.pad(x, ((0, Np - N), (0, Dp - D)))
    y = jnp.pad(y, ((0, Mp - M), (0, Dp - D)))

    check_every = _check_every(iterations)

    kernel = functools.partial(
        _sinkhorn_kernel, epsilon=float(epsilon), iterations=int(iterations),
        check_every=int(check_every), n_true=int(N), m_true=int(M))

    # Per-generation VMEM budget with headroom (v5e/v6e ~128 MiB, v7x 64 MiB),
    # instead of a universal 64 MiB cap that wastes half of v5e/v6e VMEM.
    try:
        vmem_cap = int(pltpu.get_tpu_info().vmem_capacity_bytes)
    except Exception:
        vmem_cap = 64 * 1024 * 1024          # conservative (v7x-sized) fallback
    vmem_budget = int(max(vmem_cap - 16 * 1024 * 1024, 32 * 1024 * 1024))

    pi, cost = pl.pallas_call(
        kernel,
        in_specs=[
            pl.BlockSpec(memory_space=pltpu.MemorySpace.VMEM),
            pl.BlockSpec(memory_space=pltpu.MemorySpace.VMEM),
        ],
        out_specs=(
            pl.BlockSpec(memory_space=pltpu.MemorySpace.VMEM),
            pl.BlockSpec(memory_space=pltpu.MemorySpace.SMEM),
        ),
        out_shape=(
            jax.ShapeDtypeStruct((Np, Mp), jnp.float32),
            jax.ShapeDtypeStruct((1,), jnp.float32),
        ),
        compiler_params=pltpu.CompilerParams(vmem_limit_bytes=vmem_budget),
    )(x, y)
    return cost[0], pi[:N, :M]


def sinkhorn_ref(x, y, epsilon=0.5, iterations=100, check_every=1):
    """Numpy mirror of the PyTorch forward.  `check_every` mirrors the kernel's
    amortized convergence check (check_every=1 == original per-iteration break)."""
    x = np.asarray(x, np.float32)
    y = np.asarray(y, np.float32)
    N, M = x.shape[0], y.shape[0]
    C = ((x[:, None, :] - y[None, :, :]) ** 2).sum(-1).astype(np.float32)
    a = np.full((N,), 1.0 / N, np.float32)
    b = np.full((M,), 1.0 / M, np.float32)
    u = np.zeros((N,), np.float32)
    v = np.zeros((M,), np.float32)

    def lse(K, axis):
        m = K.max(axis=axis, keepdims=True)
        return (m + np.log(np.exp(K - m).sum(axis=axis, keepdims=True))).squeeze(axis)

    for i in range(iterations):
        u0, v0 = u, v
        K = (-C + u[:, None] + v[None, :]) / epsilon
        u = epsilon * (np.log(a + 1e-8) - lse(K, 1)) + u
        Kt = ((-C + u[:, None] + v[None, :]) / epsilon).T
        v = epsilon * (np.log(b + 1e-8) - lse(Kt, 1)) + v
        mean_diff = np.abs(u - u0).sum() + np.abs(v - v0).sum()
        if (i + 1) % check_every == 0 and mean_diff < 0.1:
            break
    K = (-C + u[:, None] + v[None, :]) / epsilon
    pi = np.exp(K)
    return (pi * C).sum(), pi


if __name__ == "__main__":
    key = jax.random.PRNGKey(0)
    kx, ky = jax.random.split(key)
    N, M, D = 8, 8, 32
    x = jax.random.normal(kx, (N, D), dtype=jnp.float32) * 0.5
    y = jax.random.normal(ky, (M, D), dtype=jnp.float32) * 0.5

    cost, pi = sinkhorn_pallas(x, y, epsilon=0.5, iterations=100)
    jax.block_until_ready((cost, pi))

    cost_r, pi_r = sinkhorn_ref(np.asarray(x), np.asarray(y), 0.5, 100,
                                check_every=_check_every(100))
    assert pi.shape == (N, M)
    assert np.allclose(float(cost), cost_r, rtol=1e-3, atol=1e-3), (float(cost), cost_r)
    assert np.allclose(np.asarray(pi), pi_r, rtol=1e-3, atol=1e-3)
    print("KERNEL_OK")
</pallas_src>

<mosaic_0001>
module attributes {stable_mosaic.version = 11 : i64} {
  func.func @_sinkhorn_kernel(%arg0: memref<8x128xf32, #tpu.memory_space<vmem>>, %arg1: memref<128x128xf32, #tpu.memory_space<vmem>>, %arg2: memref<8x128xf32, #tpu.memory_space<vmem>>, %arg3: memref<1xf32, #tpu.memory_space<smem>>) attributes {dimension_semantics = [], scalar_prefetch = 0 : i64, scratch_operands = 0 : i64, tpu.core_type = #tpu.core_type<tc>} {
    %c0 = arith.constant 0 : index
    %c0_0 = arith.constant 0 : index
    %0 = vector.load %arg0[%c0, %c0_0] : memref<8x128xf32, #tpu.memory_space<vmem>>, vector<8x128xf32>
    %c0_1 = arith.constant 0 : index
    %c0_2 = arith.constant 0 : index
    %1 = vector.load %arg1[%c0_1, %c0_2] : memref<128x128xf32, #tpu.memory_space<vmem>>, vector<128x128xf32>
    %2 = tpu.iota {dimensions = array<i32: 0>} : vector<8x1xi32>
    %c8_i32 = arith.constant 8 : i32
    %3 = vector.broadcast %c8_i32 : i32 to vector<8x1xi32>
    %4 = arith.cmpi slt, %2, %3 : vector<8x1xi32>
    %5 = tpu.iota {dimensions = array<i32: 1>} : vector<1x128xi32>
    %c8_i32_3 = arith.constant 8 : i32
    %6 = vector.broadcast %c8_i32_3 : i32 to vector<1x128xi32>
    %7 = arith.cmpi slt, %5, %6 : vector<1x128xi32>
    %8 = vector.broadcast %4 : vector<8x1xi1> to vector<8x128xi1>
    %9 = vector.broadcast %7 : vector<1x128xi1> to vector<8x128xi1>
    %10 = arith.andi %8, %9 : vector<8x128xi1>
    %11 = arith.mulf %0, %0 : vector<8x128xf32>
    %cst = arith.constant dense<0.000000e+00> : vector<8xf32>
    %12 = vector.multi_reduction <add>, %11, %cst [1] : vector<8x128xf32> to vector<8xf32>
    %13 = vector.shape_cast %12 : vector<8xf32> to vector<8x1xf32>
    %cst_4 = arith.constant 1.000000e+00 : f32
    %14 = vector.broadcast %cst_4 : f32 to vector<1x128xf32>
    %15 = arith.mulf %1, %1 : vector<128x128xf32>
    %cst_5 = arith.constant dense<0.000000e+00> : vector<1x128xf32>
    %16 = tpu.matmul %14, %15, %cst_5 {dimension_numbers = #tpu.dot_dimension_numbers<[1], [1], [0], [0], [0, 0, 1, 0], [], []>} : vector<1x128xf32>, vector<128x128xf32>, vector<1x128xf32> -> vector<1x128xf32>
    %cst_6 = arith.constant dense<0.000000e+00> : vector<8x128xf32>
    %17 = tpu.matmul %0, %1, %cst_6 {dimension_numbers = #tpu.dot_dimension_numbers<[1], [1], [0], [0], [0, 0, 1, 0], [], []>} : vector<8x128xf32>, vector<128x128xf32>, vector<8x128xf32> -> vector<8x128xf32>
    %18 = vector.broadcast %13 : vector<8x1xf32> to vector<8x128xf32>
    %19 = vector.broadcast %16 : vector<1x128xf32> to vector<8x128xf32>
    %20 = arith.addf %18, %19 : vector<8x128xf32>
    %cst_7 = arith.constant 2.000000e+00 : f32
    %21 = vector.broadcast %cst_7 : f32 to vector<8x128xf32>
    %22 = arith.mulf %21, %17 : vector<8x128xf32>
    %23 = arith.subf %20, %22 : vector<8x128xf32>
    %cst_8 = arith.constant 0.000000e+00 : f32
    %24 = vector.broadcast %cst_8 : f32 to vector<8x128xf32>
    %25 = arith.maximumf %23, %24 : vector<8x128xf32>
    %cst_9 = arith.constant 0.000000e+00 : f32
    %cst_10 = arith.constant 2.000000e+00 : f32
    %26 = arith.subf %cst_9, %cst_10 : f32
    %27 = vector.broadcast %26 : f32 to vector<8x128xf32>
    %28 = arith.mulf %25, %27 : vector<8x128xf32>
    %cst_11 = arith.constant -1.000000e+30 : f32
    %29 = vector.broadcast %cst_11 : f32 to vector<8x128xf32>
    %30 = arith.select %10, %28, %29 : vector<8x128xi1>, vector<8x128xf32>
    %cst_12 = arith.constant 1.000000e+00 : f32
    %31 = vector.broadcast %cst_12 : f32 to vector<128x1xf32>
    %cst_13 = arith.constant 0.000000e+00 : f32
    %32 = vector.broadcast %cst_13 : f32 to vector<8x1xf32>
    %cst_14 = arith.constant 0.000000e+00 : f32
    %33 = vector.broadcast %cst_14 : f32 to vector<1x128xf32>
    %cst_15 = arith.constant -2.07944155 : f32
    %cst_16 = arith.constant 0.125000015 : f32
    %cst_17 = arith.constant -2.07944155 : f32
    %cst_18 = arith.constant 5.000000e-01 : f32
    %cst_19 = arith.constant 1.000000e-01 : f32
    %c0_i32 = arith.constant 0 : i32
    %c0_i32_20 = arith.constant 0 : i32
    %34:4 = scf.while (%arg4 = %c0_i32, %arg5 = %32, %arg6 = %33, %arg7 = %c0_i32_20) : (i32, vector<8x1xf32>, vector<1x128xf32>, i32) -> (i32, vector<8x1xf32>, vector<1x128xf32>, i32) {
      %c100_i32 = arith.constant 100 : i32
      %51 = arith.cmpi slt, %arg4, %c100_i32 : i32
      %c0_i32_28 = arith.constant 0 : i32
      %52 = arith.cmpi eq, %arg7, %c0_i32_28 : i32
      %53 = arith.andi %51, %52 : i1
      scf.condition(%53) %arg4, %arg5, %arg6, %arg7 : i32, vector<8x1xf32>, vector<1x128xf32>, i32
    } do {
    ^bb0(%arg4: i32, %arg5: vector<8x1xf32>, %arg6: vector<1x128xf32>, %arg7: i32):
      %51 = vector.broadcast %arg5 : vector<8x1xf32> to vector<8x128xf32>
      %52 = arith.addf %30, %51 : vector<8x128xf32>
      %53 = vector.broadcast %arg6 : vector<1x128xf32> to vector<8x128xf32>
      %54 = arith.addf %52, %53 : vector<8x128xf32>
      %cst_28 = arith.constant dense<0xFF800000> : vector<8xf32>
      %55 = vector.multi_reduction <maximumf>, %54, %cst_28 [1] : vector<8x128xf32> to vector<8xf32>
      %56 = vector.shape_cast %55 : vector<8xf32> to vector<8x1xf32>
      %57 = vector.broadcast %56 : vector<8x1xf32> to vector<8x128xf32>
      %58 = arith.subf %54, %57 : vector<8x128xf32>
      %59 = math.exp %58 : vector<8x128xf32>
      %cst_29 = arith.constant dense<0.000000e+00> : vector<8x1xf32>
      %60 = tpu.matmul %59, %31, %cst_29 {dimension_numbers = #tpu.dot_dimension_numbers<[1], [0], [0], [1], [0, 0, 1, 1], [], []>} : vector<8x128xf32>, vector<128x1xf32>, vector<8x1xf32> -> vector<8x1xf32>
      %61 = math.log %60 : vector<8x1xf32>
      %62 = arith.addf %56, %61 : vector<8x1xf32>
      %63 = vector.broadcast %cst_15 : f32 to vector<8x1xf32>
      %64 = arith.subf %63, %62 : vector<8x1xf32>
      %65 = arith.addf %64, %arg5 : vector<8x1xf32>
      %cst_30 = arith.constant 0.000000e+00 : f32
      %66 = vector.broadcast %cst_30 : f32 to vector<8x1xf32>
      %67 = arith.select %4, %65, %66 : vector<8x1xi1>, vector<8x1xf32>
      %68 = vector.broadcast %cst_16 : f32 to vector<8x1xf32>
      %69 = arith.divf %68, %60 : vector<8x1xf32>
      %cst_31 = arith.constant 0.000000e+00 : f32
      %70 = vector.broadcast %cst_31 : f32 to vector<8x1xf32>
      %71 = arith.select %4, %69, %70 : vector<8x1xi1>, vector<8x1xf32>
      %72 = vector.broadcast %71 : vector<8x1xf32> to vector<8x128xf32>
      %73 = arith.mulf %59, %72 : vector<8x128xf32>
      %cst_32 = arith.constant dense<0.000000e+00> : vector<128xf32>
      %74 = vector.multi_reduction <add>, %73, %cst_32 [0] : vector<8x128xf32> to vector<128xf32>
      %75 = vector.shape_cast %74 : vector<128xf32> to vector<1x128xf32>
      %cst_33 = arith.constant 1.000000e+00 : f32
      %76 = vector.broadcast %cst_33 : f32 to vector<1x128xf32>
      %77 = arith.select %7, %75, %76 : vector<1x128xi1>, vector<1x128xf32>
      %78 = math.log %77 : vector<1x128xf32>
      %79 = vector.broadcast %cst_17 : f32 to vector<1x128xf32>
      %80 = arith.subf %79, %78 : vector<1x128xf32>
      %81 = arith.addf %80, %arg6 : vector<1x128xf32>
      %cst_34 = arith.constant 0.000000e+00 : f32
      %82 = vector.broadcast %cst_34 : f32 to vector<1x128xf32>
      %83 = arith.select %7, %81, %82 : vector<1x128xi1>, vector<1x128xf32>
      %84 = vector.broadcast %67 : vector<8x1xf32> to vector<8x128xf32>
      %85 = arith.addf %30, %84 : vector<8x128xf32>
      %86 = vector.broadcast %83 : vector<1x128xf32> to vector<8x128xf32>
      %87 = arith.addf %85, %86 : vector<8x128xf32>
      %cst_35 = arith.constant dense<0xFF800000> : vector<8xf32>
      %88 = vector.multi_reduction <maximumf>, %87, %cst_35 [1] : vector<8x128xf32> to vector<8xf32>
      %89 = vector.shape_cast %88 : vector<8xf32> to vector<8x1xf32>
      %90 = vector.broadcast %89 : vector<8x1xf32> to vector<8x128xf32>
      %91 = arith.subf %87, %90 : vector<8x128xf32>
      %92 = math.exp %91 : vector<8x128xf32>
      %cst_36 = arith.constant dense<0.000000e+00> : vector<8x1xf32>
      %93 = tpu.matmul %92, %31, %cst_36 {dimension_numbers = #tpu.dot_dimension_numbers<[1], [0], [0], [1], [0, 0, 1, 1], [], []>} : vector<8x128xf32>, vector<128x1xf32>, vector<8x1xf32> -> vector<8x1xf32>
      %94 = math.log %93 : vector<8x1xf32>
      %95 = arith.addf %89, %94 : vector<8x1xf32>
      %96 = vector.broadcast %cst_15 : f32 to vector<8x1xf32>
      %97 = arith.subf %96, %95 : vector<8x1xf32>
      %98 = arith.addf %97, %67 : vector<8x1xf32>
      %cst_37 = arith.constant 0.000000e+00 : f32
      %99 = vector.broadcast %cst_37 : f32 to vector<8x1xf32>
      %100 = arith.select %4, %98, %99 : vector<8x1xi1>, vector<8x1xf32>
      %101 = vector.broadcast %cst_16 : f32 to vector<8x1xf32>
      %102 = arith.divf %101, %93 : vector<8x1xf32>
      %cst_38 = arith.constant 0.000000e+00 : f32
      %103 = vector.broadcast %cst_38 : f32 to vector<8x1xf32>
      %104 = arith.select %4, %102, %103 : vector<8x1xi1>, vector<8x1xf32>
      %105 = vector.broadcast %104 : vector<8x1xf32> to vector<8x128xf32>
      %106 = arith.mulf %92, %105 : vector<8x128xf32>
      %cst_39 = arith.constant dense<0.000000e+00> : vector<128xf32>
      %107 = vector.multi_reduction <add>, %106, %cst_39 [0] : vector<8x128xf32> to vector<128xf32>
      %108 = vector.shape_cast %107 : vector<128xf32> to vector<1x128xf32>
      %cst_40 = arith.constant 1.000000e+00 : f32
      %109 = vector.broadcast %cst_40 : f32 to vector<1x128xf32>
      %110 = arith.select %7, %108, %109 : vector<1x128xi1>, vector<1x128xf32>
      %111 = math.log %110 : vector<1x128xf32>
      %112 = vector.broadcast %cst_17 : f32 to vector<1x128xf32>
      %113 = arith.subf %112, %111 : vector<1x128xf32>
      %114 = arith.addf %113, %83 : vector<1x128xf32>
      %cst_41 = arith.constant 0.000000e+00 : f32
      %115 = vector.broadcast %cst_41 : f32 to vector<1x128xf32>
      %116 = arith.select %7, %114, %115 : vector<1x128xi1>, vector<1x128xf32>
      %117 = vector.broadcast %100 : vector<8x1xf32> to vector<8x128xf32>
      %118 = arith.addf %30, %117 : vector<8x128xf32>
      %119 = vector.broadcast %116 : vector<1x128xf32> to vector<8x128xf32>
      %120 = arith.addf %118, %119 : vector<8x128xf32>
      %cst_42 = arith.constant dense<0xFF800000> : vector<8xf32>
      %121 = vector.multi_reduction <maximumf>, %120, %cst_42 [1] : vector<8x128xf32> to vector<8xf32>
      %122 = vector.shape_cast %121 : vector<8xf32> to vector<8x1xf32>
      %123 = vector.broadcast %122 : vector<8x1xf32> to vector<8x128xf32>
      %124 = arith.subf %120, %123 : vector<8x128xf32>
      %125 = math.exp %124 : vector<8x128xf32>
      %cst_43 = arith.constant dense<0.000000e+00> : vector<8x1xf32>
      %126 = tpu.matmul %125, %31, %cst_43 {dimension_numbers = #tpu.dot_dimension_numbers<[1], [0], [0], [1], [0, 0, 1, 1], [], []>} : vector<8x128xf32>, vector<128x1xf32>, vector<8x1xf32> -> vector<8x1xf32>
      %127 = math.log %126 : vector<8x1xf32>
      %128 = arith.addf %122, %127 : vector<8x1xf32>
      %129 = vector.broadcast %cst_15 : f32 to vector<8x1xf32>
      %130 = arith.subf %129, %128 : vector<8x1xf32>
      %131 = arith.addf %130, %100 : vector<8x1xf32>
      %cst_44 = arith.constant 0.000000e+00 : f32
      %132 = vector.broadcast %cst_44 : f32 to vector<8x1xf32>
      %133 = arith.select %4, %131, %132 : vector<8x1xi1>, vector<8x1xf32>
      %134 = vector.broadcast %cst_16 : f32 to vector<8x1xf32>
      %135 = arith.divf %134, %126 : vector<8x1xf32>
      %cst_45 = arith.constant 0.000000e+00 : f32
      %136 = vector.broadcast %cst_45 : f32 to vector<8x1xf32>
      %137 = arith.select %4, %135, %136 : vector<8x1xi1>, vector<8x1xf32>
      %138 = vector.broadcast %137 : vector<8x1xf32> to vector<8x128xf32>
      %139 = arith.mulf %125, %138 : vector<8x128xf32>
      %cst_46 = arith.constant dense<0.000000e+00> : vector<128xf32>
      %140 = vector.multi_reduction <add>, %139, %cst_46 [0] : vector<8x128xf32> to vector<128xf32>
      %141 = vector.shape_cast %140 : vector<128xf32> to vector<1x128xf32>
      %cst_47 = arith.constant 1.000000e+00 : f32
      %142 = vector.broadcast %cst_47 : f32 to vector<1x128xf32>
      %143 = arith.select %7, %141, %142 : vector<1x128xi1>, vector<1x128xf32>
      %144 = math.log %143 : vector<1x128xf32>
      %145 = vector.broadcast %cst_17 : f32 to vector<1x128xf32>
      %146 = arith.subf %145, %144 : vector<1x128xf32>
      %147 = arith.addf %146, %116 : vector<1x128xf32>
      %cst_48 = arith.constant 0.000000e+00 : f32
      %148 = vector.broadcast %cst_48 : f32 to vector<1x128xf32>
      %149 = arith.select %7, %147, %148 : vector<1x128xi1>, vector<1x128xf32>
      %150 = vector.broadcast %133 : vector<8x1xf32> to vector<8x128xf32>
      %151 = arith.addf %30, %150 : vector<8x128xf32>
      %152 = vector.broadcast %149 : vector<1x128xf32> to vector<8x128xf32>
      %153 = arith.addf %151, %152 : vector<8x128xf32>
      %cst_49 = arith.constant dense<0xFF800000> : vector<8xf32>
      %154 = vector.multi_reduction <maximumf>, %153, %cst_49 [1] : vector<8x128xf32> to vector<8xf32>
      %155 = vector.shape_cast %154 : vector<8xf32> to vector<8x1xf32>
      %156 = vector.broadcast %155 : vector<8x1xf32> to vector<8x128xf32>
      %157 = arith.subf %153, %156 : vector<8x128xf32>
      %158 = math.exp %157 : vector<8x128xf32>
      %cst_50 = arith.constant dense<0.000000e+00> : vector<8x1xf32>
      %159 = tpu.matmul %158, %31, %cst_50 {dimension_numbers = #tpu.dot_dimension_numbers<[1], [0], [0], [1], [0, 0, 1, 1], [], []>} : vector<8x128xf32>, vector<128x1xf32>, vector<8x1xf32> -> vector<8x1xf32>
      %160 = math.log %159 : vector<8x1xf32>
      %161 = arith.addf %155, %160 : vector<8x1xf32>
      %162 = vector.broadcast %cst_15 : f32 to vector<8x1xf32>
      %163 = arith.subf %162, %161 : vector<8x1xf32>
      %164 = arith.addf %163, %133 : vector<8x1xf32>
      %cst_51 = arith.constant 0.000000e+00 : f32
      %165 = vector.broadcast %cst_51 : f32 to vector<8x1xf32>
      %166 = arith.select %4, %164, %165 : vector<8x1xi1>, vector<8x1xf32>
      %167 = vector.broadcast %cst_16 : f32 to vector<8x1xf32>
      %168 = arith.divf %167, %159 : vector<8x1xf32>
      %cst_52 = arith.constant 0.000000e+00 : f32
      %169 = vector.broadcast %cst_52 : f32 to vector<8x1xf32>
      %170 = arith.select %4, %168, %169 : vector<8x1xi1>, vector<8x1xf32>
      %171 = vector.broadcast %170 : vector<8x1xf32> to vector<8x128xf32>
      %172 = arith.mulf %158, %171 : vector<8x128xf32>
      %cst_53 = arith.constant dense<0.000000e+00> : vector<128xf32>
      %173 = vector.multi_reduction <add>, %172, %cst_53 [0] : vector<8x128xf32> to vector<128xf32>
      %174 = vector.shape_cast %173 : vector<128xf32> to vector<1x128xf32>
      %cst_54 = arith.constant 1.000000e+00 : f32
      %175 = vector.broadcast %cst_54 : f32 to vector<1x128xf32>
      %176 = arith.select %7, %174, %175 : vector<1x128xi1>, vector<1x128xf32>
      %177 = math.log %176 : vector<1x128xf32>
      %178 = vector.broadcast %cst_17 : f32 to vector<1x128xf32>
      %179 = arith.subf %178, %177 : vector<1x128xf32>
      %180 = arith.addf %179, %149 : vector<1x128xf32>
      %cst_55 = arith.constant 0.000000e+00 : f32
      %181 = vector.broadcast %cst_55 : f32 to vector<1x128xf32>
      %182 = arith.select %7, %180, %181 : vector<1x128xi1>, vector<1x128xf32>
      %183 = arith.subf %166, %133 : vector<8x1xf32>
      %184 = math.absf %183 : vector<8x1xf32>
      %185 = vector.shape_cast %184 : vector<8x1xf32> to vector<1x8x1xf32>
      %cst_56 = arith.constant dense<0.000000e+00> : vector<1xf32>
      %186 = vector.multi_reduction <add>, %185, %cst_56 [1, 2] : vector<1x8x1xf32> to vector<1xf32>
      %187 = vector.shape_cast %186 : vector<1xf32> to vector<1x1x1xf32>
      %188 = vector.extract %187[0, 0, 0] : f32 from vector<1x1x1xf32>
      %189 = arith.subf %182, %149 : vector<1x128xf32>
      %190 = math.absf %189 : vector<1x128xf32>
      %191 = vector.shape_cast %190 : vector<1x128xf32> to vector<1x1x128xf32>
      %cst_57 = arith.constant dense<0.000000e+00> : vector<1xf32>
      %192 = vector.multi_reduction <add>, %191, %cst_57 [1, 2] : vector<1x1x128xf32> to vector<1xf32>
      %193 = vector.shape_cast %192 : vector<1xf32> to vector<1x1x1xf32>
      %194 = vector.extract %193[0, 0, 0] : f32 from vector<1x1x1xf32>
      %195 = arith.addf %188, %194 : f32
      %196 = arith.mulf %cst_18, %195 : f32
      %197 = arith.cmpf olt, %196, %cst_19 : f32
      %c1_i32 = arith.constant 1 : i32
      %c0_i32_58 = arith.constant 0 : i32
      %198 = arith.select %197, %c1_i32, %c0_i32_58 : i32
      %c4_i32 = arith.constant 4 : i32
      %199 = arith.addi %arg4, %c4_i32 : i32
      scf.yield %199, %166, %182, %198 : i32, vector<8x1xf32>, vector<1x128xf32>, i32
    }
    %35 = vector.broadcast %34#1 : vector<8x1xf32> to vector<8x128xf32>
    %36 = arith.addf %30, %35 : vector<8x128xf32>
    %37 = vector.broadcast %34#2 : vector<1x128xf32> to vector<8x128xf32>
    %38 = arith.addf %36, %37 : vector<8x128xf32>
    %39 = math.exp %38 : vector<8x128xf32>
    %c0_21 = arith.constant 0 : index
    %c0_22 = arith.constant 0 : index
    %40 = vector.load %arg2[%c0_21, %c0_22] : memref<8x128xf32, #tpu.memory_space<vmem>>, vector<8x128xf32>
    tpu.vector_store %arg2[%c0_21, %c0_22], %39 {strides = array<i32>} : memref<8x128xf32, #tpu.memory_space<vmem>>, vector<8x128xf32>,
    %cst_23 = arith.constant 0.000000e+00 : f32
    %cst_24 = arith.constant 5.000000e-01 : f32
    %41 = arith.subf %cst_23, %cst_24 : f32
    %42 = arith.mulf %39, %30 : vector<8x128xf32>
    %cst_25 = arith.constant 0.000000e+00 : f32
    %43 = vector.broadcast %cst_25 : f32 to vector<8x128xf32>
    %44 = arith.select %10, %42, %43 : vector<8x128xi1>, vector<8x128xf32>
    %45 = vector.shape_cast %44 : vector<8x128xf32> to vector<1x8x128xf32>
    %cst_26 = arith.constant dense<0.000000e+00> : vector<1xf32>
    %46 = vector.multi_reduction <add>, %45, %cst_26 [1, 2] : vector<1x8x128xf32> to vector<1xf32>
    %47 = vector.shape_cast %46 : vector<1xf32> to vector<1x1x1xf32>
    %48 = vector.extract %47[0, 0, 0] : f32 from vector<1x1x1xf32>
    %49 = arith.mulf %41, %48 : f32
    %c0_27 = arith.constant 0 : index
    %50 = memref.load %arg3[%c0_27] : memref<1xf32, #tpu.memory_space<smem>>
    memref.store %49, %arg3[%c0_27] : memref<1xf32, #tpu.memory_space<smem>>
    return
  }
}

</mosaic_0001>

<llo_original>
// kernel: sinkhorn_pallas.1
$region0: #{sinkhorn_pallas.1}
  #allocation0 [shape = 'u32[]', space=smem, size = 0x4, offset = 0x4, fixed_abs, tag = 'smem constant byte address 0x4 - core index']
  #allocation1 [shape = 'u32[144,128]{1,0:T(1,128)}', space=vmem, size = 0x12000, scoped, tag = 'internal scratch']
  %s0 = inlined_call_operand.vmem [shape: f32[8,128], index: 0, kind: input, shape index: {}]
  %s1 = inlined_call_operand.vmem [shape: f32[128,128], index: 1, kind: input, shape index: {}]
  %s2 = inlined_call_operand.hbm [shape: f32[8,128], index: 2, kind: output, shape index: {0}]
  %s3 = inlined_call_operand.hbm [shape: f32[1], index: 3, kind: output, shape index: {1}]
  %4 = xla_tuple %s2, %s3
  %s5 = sld [smem:[#allocation0]]
  $region33: #{sinkhorn_pallas.1} parent=0
    _
  %s7 = ssub.s32 1, %s5
  %s8 = scalar_select 0, %s7, %s5
  $region1: #{sinkhorn_pallas.1} parent=0
    #allocation2 [shape = 'u8[4096]{0}', space=vmem, size = 0x1000, scoped, tag = 'output window, operand 0, single buffered']
    #allocation3 [shape = 's32[1]{0}', space=sflag, size = 0x4, scoped, tag = 'scoped memory for sinkhorn_pallas.1']
    #allocation4 [shape = 's32[1]{0}', space=sflag, size = 0x4, scoped, tag = 'scoped memory for sinkhorn_pallas.1']
    #allocation5 [shape = 'u8[512]{0}', space=smem, size = 0x200, scoped, tag = 'output window, operand 1, single buffered']
    %9 = vsyncpa [#allocation3], 0
    %10 = vsyncpa [#allocation4], 0
    // Predicated region
    $region2: #{sinkhorn_pallas.1} parent=1 // pred_check
      _
    $region3: #{sinkhorn_pallas.1} parent=1 // pred_check_branch
      %12 = sbr.rel (0) target = $region5
    $region4: #{sinkhorn_pallas.1} parent=1 // pred_region
      _
    $region5: #{sinkhorn_pallas.1} parent=1 // pred_fallthru
      _
    // Predicated region
    $region6: #{sinkhorn_pallas.1} parent=1 // pred_check
      _
    $region7: #{sinkhorn_pallas.1} parent=1 // pred_check_branch
      %14 = sbr.rel (0) target = $region9
    $region8: #{sinkhorn_pallas.1} parent=1 // pred_region
      _
    $region9: #{sinkhorn_pallas.1} parent=1 // pred_fallthru
      _
    %v15 = vld [vmem:[%s0] sm:$0xff]
    %v16 = vld [vmem:[%s1] sm:$0xff]
    %v17 = vld [vmem:[%s1 + $0x8] sm:$0xff]
    %v18 = vld [vmem:[%s1 + $0x10] sm:$0xff]
    %v19 = vld [vmem:[%s1 + $0x18] sm:$0xff]
    %v20 = vld [vmem:[%s1 + $0x20] sm:$0xff]
    %v21 = vld [vmem:[%s1 + $0x28] sm:$0xff]
    %v22 = vld [vmem:[%s1 + $0x30] sm:$0xff]
    %v23 = vld [vmem:[%s1 + $0x38] sm:$0xff]
    %v24 = vld [vmem:[%s1 + $0x40] sm:$0xff]
    %v25 = vld [vmem:[%s1 + $0x48] sm:$0xff]
    %v26 = vld [vmem:[%s1 + $0x50] sm:$0xff]
    %v27 = vld [vmem:[%s1 + $0x58] sm:$0xff]
    %v28 = vld [vmem:[%s1 + $0x60] sm:$0xff]
    %v29 = vld [vmem:[%s1 + $0x68] sm:$0xff]
    %v30 = vld [vmem:[%s1 + $0x70] sm:$0xff]
    %v31 = vld [vmem:[%s1 + $0x78] sm:$0xff]
    %v32 = vlaneseq
    %v33 = vshrl.u32 %v32, 7
    %vm34 = vcmp.lt.s32.totalorder %v33, 8
    %v35 = vlaneseq
    %v36 = vand.u32 %v35, 127
    %vm37 = vcmp.lt.s32.totalorder %v36, 8
    %v38 = vsel %vm34, 1, 0
    %vm39 = vcmp.eq.s32.totalorder %v38, 1
    %v40 = vsel %vm37, 1, 0
    %vm41 = vcmp.eq.s32.totalorder %v40, 1
    %vm42 = vmand %vm39, %vm41
    %v43 = vmul.f32 %v15, %v15
    %44 = vadd.xlane.f32.xlu0 %v43
    %v45 = vpop.xlane.xlu0 %44
    %v46 = vmul.f32 %v16, %v16
    %v47 = vmul.f32 %v17, %v17
    %v48 = vmul.f32 %v18, %v18
    %v49 = vmul.f32 %v19, %v19
    %v50 = vmul.f32 %v20, %v20
    %v51 = vmul.f32 %v21, %v21
    %v52 = vmul.f32 %v22, %v22
    %v53 = vmul.f32 %v23, %v23
    %v54 = vmul.f32 %v24, %v24
    %v55 = vmul.f32 %v25, %v25
    %v56 = vmul.f32 %v26, %v26
    %v57 = vmul.f32 %v27, %v27
    %v58 = vmul.f32 %v28, %v28
    %v59 = vmul.f32 %v29, %v29
    %v60 = vmul.f32 %v30, %v30
    %v61 = vmul.f32 %v31, %v31
    %62 = vmatprep.subr.mxu0 0.0
    %63 = vmatpush1.xpose.msra.mxu0 %v61
    %64 = vmatprep.subr.mxu0 0.0
    %65 = vmatpush1.xpose.msra.mxu0 %v60
    %66 = vmatprep.subr.mxu0 0.0
    %67 = vmatpush1.xpose.msra.mxu0 %v59
    %68 = vmatprep.subr.mxu0 0.0
    %69 = vmatpush1.xpose.msra.mxu0 %v58
    %70 = vmatprep.subr.mxu0 0.0
    %71 = vmatpush1.xpose.msra.mxu0 %v57
    %72 = vmatprep.subr.mxu0 0.0
    %73 = vmatpush1.xpose.msra.mxu0 %v56
    %74 = vmatprep.subr.mxu0 0.0
    %75 = vmatpush1.xpose.msra.mxu0 %v55
    %76 = vmatprep.subr.mxu0 0.0
    %77 = vmatpush1.xpose.msra.mxu0 %v54
    %78 = vmatprep.subr.mxu0 0.0
    %79 = vmatpush1.xpose.msra.mxu0 %v53
    %80 = vmatprep.subr.mxu0 0.0
    %81 = vmatpush1.xpose.msra.mxu0 %v52
    %82 = vmatprep.subr.mxu0 0.0
    %83 = vmatpush1.xpose.msra.mxu0 %v51
    %84 = vmatprep.subr.mxu0 0.0
    %85 = vmatpush1.xpose.msra.mxu0 %v50
    %86 = vmatprep.subr.mxu0 0.0
    %87 = vmatpush1.xpose.msra.mxu0 %v49
    %88 = vmatprep.subr.mxu0 0.0
    %89 = vmatpush1.xpose.msra.mxu0 %v48
    %90 = vmatprep.subr.mxu0 0.0
    %91 = vmatpush1.xpose.msra.mxu0 %v47
    %92 = vmatprep.subr.mxu0 0.0
    %93 = vmatpush1.xpose.msra.mxu0 %v46
    %94 = vmatprep.subr.mxu0 0.0
    %95 = vmatpush2.xpose.msra.mxu0 0.0
    %96 = vmatprep.subr.mxu0 0.0
    %97 = vmatpush2.xpose.msra.mxu0 0.0
    %98 = vmatprep.subr.mxu0 0.0
    %99 = vmatpush2.xpose.msra.mxu0 0.0
    %100 = vmatprep.subr.mxu0 0.0
    %101 = vmatpush2.xpose.msra.mxu0 0.0
    %102 = vmatprep.subr.mxu0 0.0
    %103 = vmatpush2.xpose.msra.mxu0 0.0
    %104 = vmatprep.subr.mxu0 0.0
    %105 = vmatpush2.xpose.msra.mxu0 0.0
    %106 = vmatprep.subr.mxu0 0.0
    %107 = vmatpush2.xpose.msra.mxu0 0.0
    %108 = vmatprep.subr.mxu0 0.0
    %109 = vmatpush2.xpose.msra.mxu0 0.0
    %110 = vmatprep.subr.mxu0 0.0
    %111 = vmatpush2.xpose.msra.mxu0 0.0
    %112 = vmatprep.subr.mxu0 0.0
    %113 = vmatpush2.xpose.msra.mxu0 0.0
    %114 = vmatprep.subr.mxu0 0.0
    %115 = vmatpush2.xpose.msra.mxu0 0.0
    %116 = vmatprep.subr.mxu0 0.0
    %117 = vmatpush2.xpose.msra.mxu0 0.0
    %118 = vmatprep.subr.mxu0 0.0
    %119 = vmatpush2.xpose.msra.mxu0 0.0
    %120 = vmatprep.subr.mxu0 0.0
    %121 = vmatpush2.xpose.msra.mxu0 0.0
    %122 = vmatprep.subr.mxu0 0.0
    %123 = vmatpush2.xpose.msra.mxu0 0.0
    %124 = vmatprep.subr.mxu0 0.0
    %125 = vmatpush2.xpose.msra.mxu0 0.0
    %126 = vmatprep.mubr.f32.mxu0 0.0
    %127 = vmatmul.mubr.f32.gmra.mxu0 1.0
    %v128 = vpop.f32.mrf.mxu0
    %v129 = vadd.f32 0.0, %v128
    %v130 = vpop.f32.mrf.mxu0
    %131 = vdwg.mxu0
    %132 = vmatprep.subr.mxu0 0.0
    %133 = vmatpush1.xpose.msra.mxu0 %v31
    %134 = vmatprep.subr.mxu0 0.0
    %135 = vmatpush1.xpose.msra.mxu0 %v30
    %136 = vmatprep.subr.mxu0 0.0
    %137 = vmatpush1.xpose.msra.mxu0 %v29
    %138 = vmatprep.subr.mxu0 0.0
    %139 = vmatpush1.xpose.msra.mxu0 %v28
    %140 = vmatprep.subr.mxu0 0.0
    %141 = vmatpush1.xpose.msra.mxu0 %v27
    %142 = vmatprep.subr.mxu0 0.0
    %143 = vmatpush1.xpose.msra.mxu0 %v26
    %144 = vmatprep.subr.mxu0 0.0
    %145 = vmatpush1.xpose.msra.mxu0 %v25
    %146 = vmatprep.subr.mxu0 0.0
    %147 = vmatpush1.xpose.msra.mxu0 %v24
    %148 = vmatprep.subr.mxu0 0.0
    %149 = vmatpush1.xpose.msra.mxu0 %v23
    %150 = vmatprep.subr.mxu0 0.0
    %151 = vmatpush1.xpose.msra.mxu0 %v22
    %152 = vmatprep.subr.mxu0 0.0
    %153 = vmatpush1.xpose.msra.mxu0 %v21
    %154 = vmatprep.subr.mxu0 0.0
    %155 = vmatpush1.xpose.msra.mxu0 %v20
    %156 = vmatprep.subr.mxu0 0.0
    %157 = vmatpush1.xpose.msra.mxu0 %v19
    %158 = vmatprep.subr.mxu0 0.0
    %159 = vmatpush1.xpose.msra.mxu0 %v18
    %160 = vmatprep.subr.mxu0 0.0
    %161 = vmatpush1.xpose.msra.mxu0 %v17
    %162 = vmatprep.subr.mxu0 0.0
    %163 = vmatpush1.xpose.msra.mxu0 %v16
    %164 = vmatprep.subr.mxu0 0.0
    %165 = vmatpush2.xpose.msra.mxu0 0.0
    %166 = vmatprep.subr.mxu0 0.0
    %167 = vmatpush2.xpose.msra.mxu0 0.0
    %168 = vmatprep.subr.mxu0 0.0
    %169 = vmatpush2.xpose.msra.mxu0 0.0
    %170 = vmatprep.subr.mxu0 0.0
    %171 = vmatpush2.xpose.msra.mxu0 0.0
    %172 = vmatprep.subr.mxu0 0.0
    %173 = vmatpush2.xpose.msra.mxu0 0.0
    %174 = vmatprep.subr.mxu0 0.0
    %175 = vmatpush2.xpose.msra.mxu0 0.0
    %176 = vmatprep.subr.mxu0 0.0
    %177 = vmatpush2.xpose.msra.mxu0 0.0
    %178 = vmatprep.subr.mxu0 0.0
    %179 = vmatpush2.xpose.msra.mxu0 0.0
    %180 = vmatprep.subr.mxu0 0.0
    %181 = vmatpush2.xpose.msra.mxu0 0.0
    %182 = vmatprep.subr.mxu0 0.0
    %183 = vmatpush2.xpose.msra.mxu0 0.0
    %184 = vmatprep.subr.mxu0 0.0
    %185 = vmatpush2.xpose.msra.mxu0 0.0
    %186 = vmatprep.subr.mxu0 0.0
    %187 = vmatpush2.xpose.msra.mxu0 0.0
    %188 = vmatprep.subr.mxu0 0.0
    %189 = vmatpush2.xpose.msra.mxu0 0.0
    %190 = vmatprep.subr.mxu0 0.0
    %191 = vmatpush2.xpose.msra.mxu0 0.0
    %192 = vmatprep.subr.mxu0 0.0
    %193 = vmatpush2.xpose.msra.mxu0 0.0
    %194 = vmatprep.subr.mxu0 0.0
    %195 = vmatpush2.xpose.msra.mxu0 0.0
    %196 = vmatprep.mubr.f32.mxu0 0.0
    %197 = vmatmul.mubr.f32.gmra.mxu0 %v15
    %v198 = vpop.f32.mrf.mxu0
    %v199 = vadd.f32 0.0, %v198
    %v200 = vpop.f32.mrf.mxu0
    %201 = vdwg.mxu0
    %v202 = vlaneseq
    %v203 = vshrl.u32 %v202, 7
    %v204 = vsub.s32 0, %v203
    %v205 = vrot.slane %v129, %v204
    %v206 = vadd.f32 %v45, %v205
    %v207 = vmul.f32 %v199, 2.0
    %v208 = vsub.f32 %v206, %v207
    %v209 = vmax.f32 %v208, 0.0
    %v210 = vmul.f32 %v209, -2.0
    %v211 = vsel %vm42, %v210, -1e+30
    // While loop
    $region10: #{sinkhorn_pallas.1} parent=1 // loop_pre_header
      _
    $region11: #{sinkhorn_pallas.1} parent=1 // loop_header
      %s213 = sphi 0, %s689
      %v214 = vphi 0.0, %v637
      %v215 = vphi 0.0, %v658
      %s216 = sphi 0, %s688
      %p217 = scmp.lt.s32.totalorder %s213, 100
      %p218 = scmp.eq.s32.totalorder %s216, 0
      %p219 = pnand %p217, %p218
      %p220 = pneg %p219
    $region12: #{sinkhorn_pallas.1} parent=1 // loop_header_branch
      %222 = sbr.rel (%p219) target = $region16
    $region13: #{sinkhorn_pallas.1} parent=1 // loop_body
      %224 = vset.pattern.permute.xlu0 0
      %225 = vperm.xlu0 %224, %v214
      %v226 = vpop.permute.xlu0 %225
      %v228 = vadd.f32 %v211, %v226
      %v229 = vadd.f32 %v228, %v215
      %230 = vmax.xlane.f32.xlu0 %v229
      %v231 = vpop.xlane.xlu0 %230
      %v232 = vsub.f32 %v229, %v231
      %v233 = vmul.f32 %v232, 1.442695
      %v234 = vpow.pop %v233
      %235 = vmatprep.subr.mxu0 0.0
      %236 = vmatpush1.msra.mxu0 1.0
      %237 = vmatprep.subr.mxu0 0.0
      %238 = vmatpush1.msra.mxu0 1.0
      %239 = vmatprep.subr.mxu0 0.0
      %240 = vmatpush1.msra.mxu0 1.0
      %241 = vmatprep.subr.mxu0 0.0
      %242 = vmatpush1.msra.mxu0 1.0
      %243 = vmatprep.subr.mxu0 0.0
      %244 = vmatpush1.msra.mxu0 1.0
      %245 = vmatprep.subr.mxu0 0.0
      %246 = vmatpush1.msra.mxu0 1.0
      %247 = vmatprep.subr.mxu0 0.0
      %248 = vmatpush1.msra.mxu0 1.0
      %249 = vmatprep.subr.mxu0 0.0
      %250 = vmatpush1.msra.mxu0 1.0
      %251 = vmatprep.subr.mxu0 0.0
      %252 = vmatpush1.msra.mxu0 1.0
      %253 = vmatprep.subr.mxu0 0.0
      %254 = vmatpush1.msra.mxu0 1.0
      %255 = vmatprep.subr.mxu0 0.0
      %256 = vmatpush1.msra.mxu0 1.0
      %257 = vmatprep.subr.mxu0 0.0
      %258 = vmatpush1.msra.mxu0 1.0
      %259 = vmatprep.subr.mxu0 0.0
      %260 = vmatpush1.msra.mxu0 1.0
      %261 = vmatprep.subr.mxu0 0.0
      %262 = vmatpush1.msra.mxu0 1.0
      %263 = vmatprep.subr.mxu0 0.0
      %264 = vmatpush1.msra.mxu0 1.0
      %265 = vmatprep.subr.mxu0 0.0
      %266 = vmatpush1.msra.mxu0 1.0
      %267 = vmatprep.subr.mxu0 0.0
      %268 = vmatpush2.msra.mxu0 0.0
      %269 = vmatprep.subr.mxu0 0.0
      %270 = vmatpush2.msra.mxu0 0.0
      %271 = vmatprep.subr.mxu0 0.0
      %272 = vmatpush2.msra.mxu0 0.0
      %273 = vmatprep.subr.mxu0 0.0
      %274 = vmatpush2.msra.mxu0 0.0
      %275 = vmatprep.subr.mxu0 0.0
      %276 = vmatpush2.msra.mxu0 0.0
      %277 = vmatprep.subr.mxu0 0.0
      %278 = vmatpush2.msra.mxu0 0.0
      %279 = vmatprep.subr.mxu0 0.0
      %280 = vmatpush2.msra.mxu0 0.0
      %281 = vmatprep.subr.mxu0 0.0
      %282 = vmatpush2.msra.mxu0 0.0
      %283 = vmatprep.subr.mxu0 0.0
      %284 = vmatpush2.msra.mxu0 0.0
      %285 = vmatprep.subr.mxu0 0.0
      %286 = vmatpush2.msra.mxu0 0.0
      %287 = vmatprep.subr.mxu0 0.0
      %288 = vmatpush2.msra.mxu0 0.0
      %289 = vmatprep.subr.mxu0 0.0
      %290 = vmatpush2.msra.mxu0 0.0
      %291 = vmatprep.subr.mxu0 0.0
      %292 = vmatpush2.msra.mxu0 0.0
      %293 = vmatprep.subr.mxu0 0.0
      %294 = vmatpush2.msra.mxu0 0.0
      %295 = vmatprep.subr.mxu0 0.0
      %296 = vmatpush2.msra.mxu0 0.0
      %297 = vmatprep.subr.mxu0 0.0
      %298 = vmatpush2.msra.mxu0 0.0
      %299 = vmatprep.mubr.f32.mxu0 0.0
      %300 = vmatmul.mubr.f32.gmra.mxu0 %v234
      %v301 = vpop.f32.mrf.mxu0
      %v302 = vadd.f32 0.0, %v301
      %v303 = vpop.f32.mrf.mxu0
      %304 = vdwg.mxu0
      %v305 = vlog2.pop %v302
      %v306 = vmul.f32 %v305, 0.6931472
      %v307 = vadd.f32 %v231, %v306
      %v308 = vsub.f32 -2.0794415, %v307
      %v309 = vadd.f32 %v308, %v214
      %v310 = vsel %vm34, %v309, 0.0
      %v311 = vrcp.pop %v302
      %v312 = vmul.f32 0.12500001, %v311
      %v313 = vsel %vm34, %v312, 0.0
      %315 = vset.pattern.permute.xlu0 0
      %316 = vperm.xlu0 %315, %v313
      %v317 = vpop.permute.xlu0 %316
      %v319 = vmul.f32 %v234, %v317
      %v320 = vrot.slane %v319, 4
      %v321 = vadd.f32 %v319, %v320
      %v322 = vrot.slane %v321, 2
      %v323 = vadd.f32 %v321, %v322
      %v324 = vrot.slane %v323, 1
      %v325 = vadd.f32 %v323, %v324
      %v326 = vsel %vm37, %v325, 1.0
      %v327 = vlog2.pop %v326
      %v328 = vmul.f32 %v327, 0.6931472
      %v329 = vsub.f32 -2.0794415, %v328
      %v330 = vadd.f32 %v329, %v215
      %v331 = vsel %vm37, %v330, 0.0
      %333 = vset.pattern.permute.xlu0 0
      %334 = vperm.xlu0 %333, %v310
      %v335 = vpop.permute.xlu0 %334
      %v337 = vadd.f32 %v211, %v335
      %v338 = vadd.f32 %v337, %v331
      %339 = vmax.xlane.f32.xlu0 %v338
      %v340 = vpop.xlane.xlu0 %339
      %v341 = vsub.f32 %v338, %v340
      %v342 = vmul.f32 %v341, 1.442695
      %v343 = vpow.pop %v342
      %344 = vmatprep.subr.mxu0 0.0
      %345 = vmatpush1.msra.mxu0 1.0
      %346 = vmatprep.subr.mxu0 0.0
      %347 = vmatpush1.msra.mxu0 1.0
      %348 = vmatprep.subr.mxu0 0.0
      %349 = vmatpush1.msra.mxu0 1.0
      %350 = vmatprep.subr.mxu0 0.0
      %351 = vmatpush1.msra.mxu0 1.0
      %352 = vmatprep.subr.mxu0 0.0
      %353 = vmatpush1.msra.mxu0 1.0
      %354 = vmatprep.subr.mxu0 0.0
      %355 = vmatpush1.msra.mxu0 1.0
      %356 = vmatprep.subr.mxu0 0.0
      %357 = vmatpush1.msra.mxu0 1.0
      %358 = vmatprep.subr.mxu0 0.0
      %359 = vmatpush1.msra.mxu0 1.0
      %360 = vmatprep.subr.mxu0 0.0
      %361 = vmatpush1.msra.mxu0 1.0
      %362 = vmatprep.subr.mxu0 0.0
      %363 = vmatpush1.msra.mxu0 1.0
      %364 = vmatprep.subr.mxu0 0.0
      %365 = vmatpush1.msra.mxu0 1.0
      %366 = vmatprep.subr.mxu0 0.0
      %367 = vmatpush1.msra.mxu0 1.0
      %368 = vmatprep.subr.mxu0 0.0
      %369 = vmatpush1.msra.mxu0 1.0
      %370 = vmatprep.subr.mxu0 0.0
      %371 = vmatpush1.msra.mxu0 1.0
      %372 = vmatprep.subr.mxu0 0.0
      %373 = vmatpush1.msra.mxu0 1.0
      %374 = vmatprep.subr.mxu0 0.0
      %375 = vmatpush1.msra.mxu0 1.0
      %376 = vmatprep.subr.mxu0 0.0
      %377 = vmatpush2.msra.mxu0 0.0
      %378 = vmatprep.subr.mxu0 0.0
      %379 = vmatpush2.msra.mxu0 0.0
      %380 = vmatprep.subr.mxu0 0.0
      %381 = vmatpush2.msra.mxu0 0.0
      %382 = vmatprep.subr.mxu0 0.0
      %383 = vmatpush2.msra.mxu0 0.0
      %384 = vmatprep.subr.mxu0 0.0
      %385 = vmatpush2.msra.mxu0 0.0
      %386 = vmatprep.subr.mxu0 0.0
      %387 = vmatpush2.msra.mxu0 0.0
      %388 = vmatprep.subr.mxu0 0.0
      %389 = vmatpush2.msra.mxu0 0.0
      %390 = vmatprep.subr.mxu0 0.0
      %391 = vmatpush2.msra.mxu0 0.0
      %392 = vmatprep.subr.mxu0 0.0
      %393 = vmatpush2.msra.mxu0 0.0
      %394 = vmatprep.subr.mxu0 0.0
      %395 = vmatpush2.msra.mxu0 0.0
      %396 = vmatprep.subr.mxu0 0.0
      %397 = vmatpush2.msra.mxu0 0.0
      %398 = vmatprep.subr.mxu0 0.0
      %399 = vmatpush2.msra.mxu0 0.0
      %400 = vmatprep.subr.mxu0 0.0
      %401 = vmatpush2.msra.mxu0 0.0
      %402 = vmatprep.subr.mxu0 0.0
      %403 = vmatpush2.msra.mxu0 0.0
      %404 = vmatprep.subr.mxu0 0.0
      %405 = vmatpush2.msra.mxu0 0.0
      %406 = vmatprep.subr.mxu0 0.0
      %407 = vmatpush2.msra.mxu0 0.0
      %408 = vmatprep.mubr.f32.mxu0 0.0
      %409 = vmatmul.mubr.f32.gmra.mxu0 %v343
      %v410 = vpop.f32.mrf.mxu0
      %v411 = vadd.f32 0.0, %v410
      %v412 = vpop.f32.mrf.mxu0
      %413 = vdwg.mxu0
      %v414 = vlog2.pop %v411
      %v415 = vmul.f32 %v414, 0.6931472
      %v416 = vadd.f32 %v340, %v415
      %v417 = vsub.f32 -2.0794415, %v416
      %v418 = vadd.f32 %v417, %v310
      %v419 = vsel %vm34, %v418, 0.0
      %v420 = vrcp.pop %v411
      %v421 = vmul.f32 0.12500001, %v420
      %v422 = vsel %vm34, %v421, 0.0
      %424 = vset.pattern.permute.xlu0 0
      %425 = vperm.xlu0 %424, %v422
      %v426 = vpop.permute.xlu0 %425
      %v428 = vmul.f32 %v343, %v426
      %v429 = vrot.slane %v428, 4
      %v430 = vadd.f32 %v428, %v429
      %v431 = vrot.slane %v430, 2
      %v432 = vadd.f32 %v430, %v431
      %v433 = vrot.slane %v432, 1
      %v434 = vadd.f32 %v432, %v433
      %v435 = vsel %vm37, %v434, 1.0
      %v436 = vlog2.pop %v435
      %v437 = vmul.f32 %v436, 0.6931472
      %v438 = vsub.f32 -2.0794415, %v437
      %v439 = vadd.f32 %v438, %v331
      %v440 = vsel %vm37, %v439, 0.0
      %442 = vset.pattern.permute.xlu0 0
      %443 = vperm.xlu0 %442, %v419
      %v444 = vpop.permute.xlu0 %443
      %v446 = vadd.f32 %v211, %v444
      %v447 = vadd.f32 %v446, %v440
      %448 = vmax.xlane.f32.xlu0 %v447
      %v449 = vpop.xlane.xlu0 %448
      %v450 = vsub.f32 %v447, %v449
      %v451 = vmul.f32 %v450, 1.442695
      %v452 = vpow.pop %v451
      %453 = vmatprep.subr.mxu0 0.0
      %454 = vmatpush1.msra.mxu0 1.0
      %455 = vmatprep.subr.mxu0 0.0
      %456 = vmatpush1.msra.mxu0 1.0
      %457 = vmatprep.subr.mxu0 0.0
      %458 = vmatpush1.msra.mxu0 1.0
      %459 = vmatprep.subr.mxu0 0.0
      %460 = vmatpush1.msra.mxu0 1.0
      %461 = vmatprep.subr.mxu0 0.0
      %462 = vmatpush1.msra.mxu0 1.0
      %463 = vmatprep.subr.mxu0 0.0
      %464 = vmatpush1.msra.mxu0 1.0
      %465 = vmatprep.subr.mxu0 0.0
      %466 = vmatpush1.msra.mxu0 1.0
      %467 = vmatprep.subr.mxu0 0.0
      %468 = vmatpush1.msra.mxu0 1.0
      %469 = vmatprep.subr.mxu0 0.0
      %470 = vmatpush1.msra.mxu0 1.0
      %471 = vmatprep.subr.mxu0 0.0
      %472 = vmatpush1.msra.mxu0 1.0
      %473 = vmatprep.subr.mxu0 0.0
      %474 = vmatpush1.msra.mxu0 1.0
      %475 = vmatprep.subr.mxu0 0.0
      %476 = vmatpush1.msra.mxu0 1.0
      %477 = vmatprep.subr.mxu0 0.0
      %478 = vmatpush1.msra.mxu0 1.0
      %479 = vmatprep.subr.mxu0 0.0
      %480 = vmatpush1.msra.mxu0 1.0
      %481 = vmatprep.subr.mxu0 0.0
      %482 = vmatpush1.msra.mxu0 1.0
      %483 = vmatprep.subr.mxu0 0.0
      %484 = vmatpush1.msra.mxu0 1.0
      %485 = vmatprep.subr.mxu0 0.0
      %486 = vmatpush2.msra.mxu0 0.0
      %487 = vmatprep.subr.mxu0 0.0
      %488 = vmatpush2.msra.mxu0 0.0
      %489 = vmatprep.subr.mxu0 0.0
      %490 = vmatpush2.msra.mxu0 0.0
      %491 = vmatprep.subr.mxu0 0.0
      %492 = vmatpush2.msra.mxu0 0.0
      %493 = vmatprep.subr.mxu0 0.0
      %494 = vmatpush2.msra.mxu0 0.0
      %495 = vmatprep.subr.mxu0 0.0
      %496 = vmatpush2.msra.mxu0 0.0
      %497 = vmatprep.subr.mxu0 0.0
      %498 = vmatpush2.msra.mxu0 0.0
      %499 = vmatprep.subr.mxu0 0.0
      %500 = vmatpush2.msra.mxu0 0.0
      %501 = vmatprep.subr.mxu0 0.0
      %502 = vmatpush2.msra.mxu0 0.0
      %503 = vmatprep.subr.mxu0 0.0
      %504 = vmatpush2.msra.mxu0 0.0
      %505 = vmatprep.subr.mxu0 0.0
      %506 = vmatpush2.msra.mxu0 0.0
      %507 = vmatprep.subr.mxu0 0.0
      %508 = vmatpush2.msra.mxu0 0.0
      %509 = vmatprep.subr.mxu0 0.0
      %510 = vmatpush2.msra.mxu0 0.0
      %511 = vmatprep.subr.mxu0 0.0
      %512 = vmatpush2.msra.mxu0 0.0
      %513 = vmatprep.subr.mxu0 0.0
      %514 = vmatpush2.msra.mxu0 0.0
      %515 = vmatprep.subr.mxu0 0.0
      %516 = vmatpush2.msra.mxu0 0.0
      %517 = vmatprep.mubr.f32.mxu0 0.0
      %518 = vmatmul.mubr.f32.gmra.mxu0 %v452
      %v519 = vpop.f32.mrf.mxu0
      %v520 = vadd.f32 0.0, %v519
      %v521 = vpop.f32.mrf.mxu0
      %522 = vdwg.mxu0
      %v523 = vlog2.pop %v520
      %v524 = vmul.f32 %v523, 0.6931472
      %v525 = vadd.f32 %v449, %v524
      %v526 = vsub.f32 -2.0794415, %v525
      %v527 = vadd.f32 %v526, %v419
      %v528 = vsel %vm34, %v527, 0.0
      %v529 = vrcp.pop %v520
      %v530 = vmul.f32 0.12500001, %v529
      %v531 = vsel %vm34, %v530, 0.0
      %533 = vset.pattern.permute.xlu0 0
      %534 = vperm.xlu0 %533, %v531
      %v535 = vpop.permute.xlu0 %534
      %v537 = vmul.f32 %v452, %v535
      %v538 = vrot.slane %v537, 4
      %v539 = vadd.f32 %v537, %v538
      %v540 = vrot.slane %v539, 2
      %v541 = vadd.f32 %v539, %v540
      %v542 = vrot.slane %v541, 1
      %v543 = vadd.f32 %v541, %v542
      %v544 = vsel %vm37, %v543, 1.0
      %v545 = vlog2.pop %v544
      %v546 = vmul.f32 %v545, 0.6931472
      %v547 = vsub.f32 -2.0794415, %v546
      %v548 = vadd.f32 %v547, %v440
      %v549 = vsel %vm37, %v548, 0.0
      %551 = vset.pattern.permute.xlu0 0
      %552 = vperm.xlu0 %551, %v528
      %v553 = vpop.permute.xlu0 %552
      %v555 = vadd.f32 %v211, %v553
      %v556 = vadd.f32 %v555, %v549
      %557 = vmax.xlane.f32.xlu0 %v556
      %v558 = vpop.xlane.xlu0 %557
      %v559 = vsub.f32 %v556, %v558
      %v560 = vmul.f32 %v559, 1.442695
      %v561 = vpow.pop %v560
      %562 = vmatprep.subr.mxu0 0.0
      %563 = vmatpush1.msra.mxu0 1.0
      %564 = vmatprep.subr.mxu0 0.0
      %565 = vmatpush1.msra.mxu0 1.0
      %566 = vmatprep.subr.mxu0 0.0
      %567 = vmatpush1.msra.mxu0 1.0
      %568 = vmatprep.subr.mxu0 0.0
      %569 = vmatpush1.msra.mxu0 1.0
      %570 = vmatprep.subr.mxu0 0.0
      %571 = vmatpush1.msra.mxu0 1.0
      %572 = vmatprep.subr.mxu0 0.0
      %573 = vmatpush1.msra.mxu0 1.0
      %574 = vmatprep.subr.mxu0 0.0
      %575 = vmatpush1.msra.mxu0 1.0
      %576 = vmatprep.subr.mxu0 0.0
      %577 = vmatpush1.msra.mxu0 1.0
      %578 = vmatprep.subr.mxu0 0.0
      %579 = vmatpush1.msra.mxu0 1.0
      %580 = vmatprep.subr.mxu0 0.0
      %581 = vmatpush1.msra.mxu0 1.0
      %582 = vmatprep.subr.mxu0 0.0
      %583 = vmatpush1.msra.mxu0 1.0
      %584 = vmatprep.subr.mxu0 0.0
      %585 = vmatpush1.msra.mxu0 1.0
      %586 = vmatprep.subr.mxu0 0.0
      %587 = vmatpush1.msra.mxu0 1.0
      %588 = vmatprep.subr.mxu0 0.0
      %589 = vmatpush1.msra.mxu0 1.0
      %590 = vmatprep.subr.mxu0 0.0
      %591 = vmatpush1.msra.mxu0 1.0
      %592 = vmatprep.subr.mxu0 0.0
      %593 = vmatpush1.msra.mxu0 1.0
      %594 = vmatprep.subr.mxu0 0.0
      %595 = vmatpush2.msra.mxu0 0.0
      %596 = vmatprep.subr.mxu0 0.0
      %597 = vmatpush2.msra.mxu0 0.0
      %598 = vmatprep.subr.mxu0 0.0
      %599 = vmatpush2.msra.mxu0 0.0
      %600 = vmatprep.subr.mxu0 0.0
      %601 = vmatpush2.msra.mxu0 0.0
      %602 = vmatprep.subr.mxu0 0.0
      %603 = vmatpush2.msra.mxu0 0.0
      %604 = vmatprep.subr.mxu0 0.0
      %605 = vmatpush2.msra.mxu0 0.0
      %606 = vmatprep.subr.mxu0 0.0
      %607 = vmatpush2.msra.mxu0 0.0
      %608 = vmatprep.subr.mxu0 0.0
      %609 = vmatpush2.msra.mxu0 0.0
      %610 = vmatprep.subr.mxu0 0.0
      %611 = vmatpush2.msra.mxu0 0.0
      %612 = vmatprep.subr.mxu0 0.0
      %613 = vmatpush2.msra.mxu0 0.0
      %614 = vmatprep.subr.mxu0 0.0
      %615 = vmatpush2.msra.mxu0 0.0
      %616 = vmatprep.subr.mxu0 0.0
      %617 = vmatpush2.msra.mxu0 0.0
      %618 = vmatprep.subr.mxu0 0.0
      %619 = vmatpush2.msra.mxu0 0.0
      %620 = vmatprep.subr.mxu0 0.0
      %621 = vmatpush2.msra.mxu0 0.0
      %622 = vmatprep.subr.mxu0 0.0
      %623 = vmatpush2.msra.mxu0 0.0
      %624 = vmatprep.subr.mxu0 0.0
      %625 = vmatpush2.msra.mxu0 0.0
      %626 = vmatprep.mubr.f32.mxu0 0.0
      %627 = vmatmul.mubr.f32.gmra.mxu0 %v561
      %v628 = vpop.f32.mrf.mxu0
      %v629 = vadd.f32 0.0, %v628
      %v630 = vpop.f32.mrf.mxu0
      %631 = vdwg.mxu0
      %v632 = vlog2.pop %v629
      %v633 = vmul.f32 %v632, 0.6931472
      %v634 = vadd.f32 %v558, %v633
      %v635 = vsub.f32 -2.0794415, %v634
      %v636 = vadd.f32 %v635, %v528
      %v637 = vsel %vm34, %v636, 0.0
      %v638 = vrcp.pop %v629
      %v639 = vmul.f32 0.12500001, %v638
      %v640 = vsel %vm34, %v639, 0.0
      %642 = vset.pattern.permute.xlu0 0
      %643 = vperm.xlu0 %642, %v640
      %v644 = vpop.permute.xlu0 %643
      %v646 = vmul.f32 %v561, %v644
      %v647 = vrot.slane %v646, 4
      %v648 = vadd.f32 %v646, %v647
      %v649 = vrot.slane %v648, 2
      %v650 = vadd.f32 %v648, %v649
      %v651 = vrot.slane %v650, 1
      %v652 = vadd.f32 %v650, %v651
      %v653 = vsel %vm37, %v652, 1.0
      %v654 = vlog2.pop %v653
      %v655 = vmul.f32 %v654, 0.6931472
      %v656 = vsub.f32 -2.0794415, %v655
      %v657 = vadd.f32 %v656, %v549
      %v658 = vsel %vm37, %v657, 0.0
      %v659 = vsub.f32 %v637, %v528
      %v660 = vand.u32 2147483647, %v659
      %vm661 = vcmask 7168
      %v662 = vsel %vm661, %v660, 0.0
      %663 = vadd.xlane.f32.xlu0 %v662
      %v664 = vpop.xlane.xlu0 %663
      %v665 = vrot.slane %v664, 4
      %v666 = vadd.f32 %v664, %v665
      %v667 = vrot.slane %v666, 2
      %v668 = vadd.f32 %v666, %v667
      %v669 = vrot.slane %v668, 1
      %v670 = vadd.f32 %v668, %v669
      %s671 = vtos %v670
      %v672 = vsub.f32 %v658, %v549
      %v673 = vand.u32 2147483647, %v672
      %vm674 = vcmask 1040384
      %v675 = vsel %vm674, %v673, 0.0
      %676 = vadd.xlane.f32.xlu0 %v675
      %v677 = vpop.xlane.xlu0 %676
      %v678 = vrot.slane %v677, 4
      %v679 = vadd.f32 %v677, %v678
      %v680 = vrot.slane %v679, 2
      %v681 = vadd.f32 %v679, %v680
      %v682 = vrot.slane %v681, 1
      %v683 = vadd.f32 %v681, %v682
      %s684 = vtos %v683
      %s685 = sadd.f32 %s671, %s684
      %s686 = smul.f32 %s685, 0.5
      %p687 = scmp.lt.f32.partialorder %s686, 0.1
      %s688 = scalar_select %p687, 1, 0
      %s689 = sadd.s32 %s213, 4
    $region14: #{sinkhorn_pallas.1} parent=1 // loop_footer
      _
    $region15: #{sinkhorn_pallas.1} parent=1 // loop_footer_branch
      %212 = sbr.rel target = $region11
    $region16: #{sinkhorn_pallas.1} parent=1 // loop_exit
      _
    %691 = vset.pattern.permute.xlu0 0
    %692 = vperm.xlu0 %691, %v214
    %v693 = vpop.permute.xlu0 %692
    %v695 = vadd.f32 %v211, %v693
    %v696 = vadd.f32 %v695, %v215
    %v697 = vmul.f32 %v696, 1.442695
    %v698 = vpow.pop %v697
    %699 = vst [vmem:[#allocation2] sm:$0xff] %v698
    %v700 = vmul.f32 %v698, %v211
    %v701 = vsel %vm42, %v700, 0.0
    %702 = vadd.xlane.f32.xlu0 %v701
    %v703 = vpop.xlane.xlu0 %702
    %v704 = vrot.slane %v703, 4
    %v705 = vadd.f32 %v703, %v704
    %v706 = vrot.slane %v705, 2
    %v707 = vadd.f32 %v705, %v706
    %v708 = vrot.slane %v707, 1
    %v709 = vadd.f32 %v707, %v708
    %s710 = vtos %v709
    %s711 = smul.f32 %s710, -0.5
    %s712 = scalar_lea.smem [#allocation5], 0
    %713 = sst [smem:[%s712]] %s711
    // Predicated region
    $region17: #{sinkhorn_pallas.1} parent=1 // pred_check
      _
    $region18: #{sinkhorn_pallas.1} parent=1 // pred_check_branch
      %715 = sbr.rel (0) target = $region20
    $region19: #{sinkhorn_pallas.1} parent=1 // pred_region
      %s717 = ssub.s32 128, 128
      %718 = vsyncadd [#allocation3], %s717
      %s720 = sshll.u32 [#allocation2], 4
      %s721 = int_to_ptr.vmem [resolvable:$true] %s720
      %723 = dma.vmem_to_hbm [thread:$0]  %s721, 128, %s2, [#allocation3]
    $region20: #{sinkhorn_pallas.1} parent=1 // pred_fallthru
      _
    // Predicated region
    $region21: #{sinkhorn_pallas.1} parent=1 // pred_check
      _
    $region22: #{sinkhorn_pallas.1} parent=1 // pred_check_branch
      %725 = sbr.rel (0) target = $region24
    $region23: #{sinkhorn_pallas.1} parent=1 // pred_region
      %s727 = ssub.s32 16, 16
      %728 = vsyncadd [#allocation4], %s727
      %731 = dma.smem_to_hbm [#allocation5], 16, %s3, [#allocation4]
    $region24: #{sinkhorn_pallas.1} parent=1 // pred_fallthru
      _
    // Predicated region
    $region25: #{sinkhorn_pallas.1} parent=1 // pred_check
      _
    $region26: #{sinkhorn_pallas.1} parent=1 // pred_check_branch
      %733 = sbr.rel (0) target = $region28
    $region27: #{sinkhorn_pallas.1} parent=1 // pred_region
      %734 = dma.done [#allocation3], 128
    $region28: #{sinkhorn_pallas.1} parent=1 // pred_fallthru
      _
    // Predicated region
    $region29: #{sinkhorn_pallas.1} parent=1 // pred_check
      _
    $region30: #{sinkhorn_pallas.1} parent=1 // pred_check_branch
      %736 = sbr.rel (0) target = $region32
    $region31: #{sinkhorn_pallas.1} parent=1 // pred_region
      %737 = dma.done [#allocation4], 16
    $region32: #{sinkhorn_pallas.1} parent=1 // pred_fallthru
      _
    %738 = sfence
    %739 = vsyncpa [#allocation3], 1
    %740 = vsyncpa [#allocation4], 1

</llo_original>
